<compile_context>
chip_gen: v7x
topology: tpu7x:2x2x1
jax: 0.10.0
libtpu: 0.0.40
codegen_flags: <defaults>
</compile_context>

<pallas_src>
import functools
import math

import jax
import jax.numpy as jnp
from jax.experimental import pallas as pl
from jax.experimental.pallas import tpu as pltpu


def _mha_kernel(x_ref, wqkv_ref, bqkv_ref, wo_ref, bo_ref,
                attn_ref, probs_ref, acc_ref, *, head_dim, n_valid, scale):
    """One grid step handles one (batch b, head h) pair."""
    h = pl.program_id(1)
    last_h = pl.num_programs(1) - 1
    D = head_dim

    x = x_ref[0]                      # (N, E)  -- native dtype straight into MXU
    wqkv = wqkv_ref[0]                # (E, 3D) -- this head's fused q|k|v weights
    bqkv = bqkv_ref[0]                # (1, 3D)

    # Fused Q/K/V projection for this head (one MXU op, f32 accumulation).
    qkv = jnp.dot(x, wqkv, preferred_element_type=jnp.float32) \
        + bqkv.astype(jnp.float32)                                  # (N, 3D)
    q = qkv[:, :D]
    k = qkv[:, D:2 * D]
    v = qkv[:, 2 * D:]

    # Scores: contract last axis of q against last axis of k (no explicit .T).
    s = jax.lax.dot_general(q, k, (((1,), (1,)), ((), ())),
                            preferred_element_type=jnp.float32) * scale  # (N, N)

    if n_valid < s.shape[-1]:
        # Mask padded key positions (static condition: only traced when padding).
        key_idx = jax.lax.broadcasted_iota(jnp.int32, s.shape, 1)
        s = jnp.where(key_idx < n_valid, s, -1e30)

    # Numerically-stable softmax; divide goes to the EUP (reciprocal + 1 NR step).
    m = jnp.max(s, axis=-1, keepdims=True)
    e = jnp.exp(s - m)
    denom = jnp.sum(e, axis=-1, keepdims=True)
    inv = pl.reciprocal(denom, approx=True)
    inv = inv * (2.0 - denom * inv)            # Newton refinement -> ~f32 accuracy
    p = e * inv

    probs_ref[0, 0] = p.astype(probs_ref.dtype)

    # TODO(synk): dropout is identity for p=0.0; stochastic dropout not implemented.
    ctx = jnp.dot(p.astype(v.dtype), v, preferred_element_type=jnp.float32)  # (N, D)

    # This head's contribution to the output projection: ctx_h @ wo[hD:(h+1)D, :].
    contrib = jnp.dot(ctx.astype(wo_ref.dtype), wo_ref[...],
                      preferred_element_type=jnp.float32)                    # (N, E)

    @pl.when(h == 0)
    def _():
        acc_ref[...] = jnp.zeros_like(acc_ref)

    acc_ref[...] += contrib

    @pl.when(h == last_h)
    def _():
        attn_ref[0] = (acc_ref[...] + bo_ref[...].astype(jnp.float32)).astype(attn_ref.dtype)


def _fuse_qkv_per_head(params, n_heads):
    """Pack q/k/v weights into (H, E, 3D) and biases into (H, 1, 3D)."""
    E = params["wq"].shape[0]
    D = E // n_heads

    def per_head_w(w):               # (E, E) -> (H, E, D): head h gets cols [hD:(h+1)D]
        return w.reshape(E, n_heads, D).transpose(1, 0, 2)

    def per_head_b(b):               # (1, E) -> (H, 1, D)
        return b.reshape(n_heads, D)[:, None, :]

    wqkv = jnp.concatenate([per_head_w(params["wq"]),
                            per_head_w(params["wk"]),
                            per_head_w(params["wv"])], axis=-1)   # (H, E, 3D)
    bqkv = jnp.concatenate([per_head_b(params["bq"]),
                            per_head_b(params["bk"]),
                            per_head_b(params["bv"])], axis=-1)   # (H, 1, 3D)
    return wqkv, bqkv


def _round_up(n, m):
    return -(-n // m) * m


def multi_head_attention(x, params, n_heads):
    """x: (B, N, E). params: wq,bq,wk,bk,wv,bv,wo,bo with (in,out) weights, (1,out)
    biases. Returns (attn (B,N,E), probs (B,H,N,N))."""
    B, N, E = x.shape
    assert E % n_heads == 0
    H = n_heads
    D = E // n_heads

    # Pad sequence so the (N, N) / (N, E) tiles are sublane/lane friendly.
    pad_to = 128 if N > 128 else 8
    N_pad = _round_up(N, pad_to)
    if N_pad != N:
        x = jnp.pad(x, ((0, 0), (0, N_pad - N), (0, 0)))

    wqkv, bqkv = _fuse_qkv_per_head(params, n_heads)   # (H, E, 3D), (H, 1, 3D)
    wo, bo = params["wo"], params["bo"]                # (E, E), (1, E)

    kernel = functools.partial(_mha_kernel, head_dim=D, n_valid=N,
                               scale=1.0 / math.sqrt(float(D)))

    # VMEM working-set estimate (double-buffered in/out blocks + scratch), with
    # 2x margin for compiler-internal temporaries; clamped so it is safe on v7x.
    bpe = jnp.dtype(x.dtype).itemsize
    block_bytes = (
        2 * N_pad * E * bpe                     # x block
        + 2 * (E * 3 * D + 3 * D) * bpe         # fused qkv weights + bias
        + 2 * (D * E + E) * bpe                 # wo slice + bo
        + 2 * N_pad * E * bpe                   # attn out block
        + 2 * N_pad * N_pad * 4                 # probs out block (f32)
        + N_pad * E * 4                         # f32 accumulator scratch
    )
    vmem_limit = int(min(100 << 20, max(32 << 20, 2 * block_bytes)))

    flops = 8 * B * N_pad * E * E + 4 * B * H * N_pad * N_pad * D
    cost = pl.CostEstimate(
        flops=flops,
        transcendentals=B * H * N_pad * N_pad,
        bytes_accessed=(B * N_pad * E * bpe * 2          # x in + attn out
                        + 4 * E * E * bpe + 4 * E * bpe  # weights + biases
                        + B * H * N_pad * N_pad * 4),    # probs out
    )

    attn, probs = pl.pallas_call(
        kernel,
        out_shape=(
            jax.ShapeDtypeStruct((B, N_pad, E), x.dtype),
            jax.ShapeDtypeStruct((B, H, N_pad, N_pad), jnp.float32),
        ),
        grid_spec=pltpu.PrefetchScalarGridSpec(
            num_scalar_prefetch=0,
            grid=(B, H),
            in_specs=[
                pl.BlockSpec((1, N_pad, E), lambda b, h: (b, 0, 0)),   # x (resident over h)
                pl.BlockSpec((1, E, 3 * D), lambda b, h: (h, 0, 0)),   # fused qkv weights
                pl.BlockSpec((1, 1, 3 * D), lambda b, h: (h, 0, 0)),   # fused qkv bias
                pl.BlockSpec((D, E), lambda b, h: (h, 0)),             # wo rows for head h
                pl.BlockSpec((1, E), lambda b, h: (0, 0)),             # bo
            ],
            out_specs=[
                pl.BlockSpec((1, N_pad, E), lambda b, h: (b, 0, 0)),          # attn (accum)
                pl.BlockSpec((1, 1, N_pad, N_pad), lambda b, h: (b, h, 0, 0)),  # probs
            ],
            scratch_shapes=[pltpu.VMEM((N_pad, E), jnp.float32)],
        ),
        compiler_params=pltpu.CompilerParams(
            dimension_semantics=("parallel", "arbitrary"),
            vmem_limit_bytes=vmem_limit),
        cost_estimate=cost,
    )(x, wqkv, bqkv, wo, bo)

    if N_pad != N:
        attn = attn[:, :N, :]
        probs = probs[:, :, :N, :N]
    return attn, probs


def _reference(x, params, n_heads):
    B, N, E = x.shape
    D = E // n_heads

    def lin(x, w, b):
        return x @ w + b

    def split(t):  # (B, N, E) -> (B, H, N, D)
        return t.reshape(B, N, n_heads, D).transpose(0, 2, 1, 3)

    q = split(lin(x, params["wq"], params["bq"]))
    k = split(lin(x, params["wk"], params["bk"]))
    v = split(lin(x, params["wv"], params["bv"]))
    s = jnp.einsum("bhqd,bhkd->bhqk", q, k) / math.sqrt(D)
    p = jax.nn.softmax(s, axis=-1)
    ctx = jnp.einsum("bhqk,bhkd->bhqd", p, v)
    ctx = ctx.transpose(0, 2, 1, 3).reshape(B, N, E)
    out = lin(ctx, params["wo"], params["bo"])
    return out, p


def _init_params(key, emb_size):
    # Deterministic PyTorch-Linear-style init: U(-1/sqrt(in), 1/sqrt(in)).
    bound = 1.0 / math.sqrt(emb_size)
    keys = jax.random.split(key, 8)

    def u(k, shape):
        return jax.random.uniform(k, shape, jnp.float32, minval=-bound, maxval=bound)

    return {
        "wq": u(keys[0], (emb_size, emb_size)), "bq": u(keys[1], (1, emb_size)),
        "wk": u(keys[2], (emb_size, emb_size)), "bk": u(keys[3], (1, emb_size)),
        "wv": u(keys[4], (emb_size, emb_size)), "bv": u(keys[5], (1, emb_size)),
        "wo": u(keys[6], (emb_size, emb_size)), "bo": u(keys[7], (1, emb_size)),
    }


if __name__ == "__main__":
    B, N, E, H = 2, 8, 32, 4
    key = jax.random.PRNGKey(0)
    kx, kp = jax.random.split(key)
    x = jax.random.normal(kx, (B, N, E), jnp.float32)
    params = _init_params(kp, E)

    attn, probs = multi_head_attention(x, params, H)
    attn = jax.block_until_ready(attn)
    probs = jax.block_until_ready(probs)

    attn_ref, probs_ref = _reference(x, params, H)
    assert attn.shape == (B, N, E) and probs.shape == (B, H, N, N)
    # Tolerance 1e-4: EUP exp + NR-refined approx reciprocal vs. XLA softmax.
    assert jnp.allclose(attn, attn_ref, atol=1e-4, rtol=1e-4)
    assert jnp.allclose(probs, probs_ref, atol=1e-4, rtol=1e-4)

    print("KERNEL_OK")
</pallas_src>

<mosaic_0001>
module attributes {stable_mosaic.version = 11 : i64} {
  func.func @_mha_kernel(%arg0: i32, %arg1: i32, %arg2: memref<1x8x32xf32, #tpu.memory_space<vmem>>, %arg3: memref<1x32x24xf32, #tpu.memory_space<vmem>>, %arg4: memref<1x1x24xf32, #tpu.memory_space<vmem>>, %arg5: memref<8x32xf32, #tpu.memory_space<vmem>>, %arg6: memref<1x32xf32, #tpu.memory_space<vmem>>, %arg7: memref<1x8x32xf32, #tpu.memory_space<vmem>>, %arg8: memref<1x1x8x8xf32, #tpu.memory_space<vmem>>, %arg9: memref<8x32xf32, #tpu.memory_space<vmem>>) attributes {dimension_semantics = [#tpu.dimension_semantics<parallel>, #tpu.dimension_semantics<arbitrary>], iteration_bounds = array<i64: 2, 4>, scalar_prefetch = 0 : i64, scratch_operands = 1 : i64, tpu.core_type = #tpu.core_type<tc>, window_params = [{transform_indices = @transform_0, window_bounds = array<i64: 1, 8, 32>}, {transform_indices = @transform_1, window_bounds = array<i64: 1, 32, 24>}, {transform_indices = @transform_2, window_bounds = array<i64: 1, 1, 24>}, {transform_indices = @transform_3, window_bounds = array<i64: 8, 32>}, {pipeline_mode = #tpu.pipeline_mode<synchronous>, transform_indices = @transform_4, window_bounds = array<i64: 1, 32>}, {transform_indices = @transform_5, window_bounds = array<i64: 1, 8, 32>}, {transform_indices = @transform_6, window_bounds = array<i64: 1, 1, 8, 8>}]} {
    %c0 = arith.constant 0 : index
    %c0_0 = arith.constant 0 : index
    %c0_1 = arith.constant 0 : index
    %0 = vector.load %arg2[%c0, %c0_0, %c0_1] : memref<1x8x32xf32, #tpu.memory_space<vmem>>, vector<1x8x32xf32>
    %1 = vector.shape_cast %0 : vector<1x8x32xf32> to vector<8x32xf32>
    %c0_2 = arith.constant 0 : index
    %c0_3 = arith.constant 0 : index
    %c0_4 = arith.constant 0 : index
    %2 = vector.load %arg3[%c0_2, %c0_3, %c0_4] : memref<1x32x24xf32, #tpu.memory_space<vmem>>, vector<1x32x24xf32>
    %3 = vector.shape_cast %2 : vector<1x32x24xf32> to vector<32x24xf32>
    %c0_5 = arith.constant 0 : index
    %c0_6 = arith.constant 0 : index
    %c0_7 = arith.constant 0 : index
    %4 = vector.load %arg4[%c0_5, %c0_6, %c0_7] : memref<1x1x24xf32, #tpu.memory_space<vmem>>, vector<1x1x24xf32>
    %5 = vector.shape_cast %4 : vector<1x1x24xf32> to vector<1x24xf32>
    %cst = arith.constant dense<0.000000e+00> : vector<8x24xf32>
    %6 = tpu.matmul %1, %3, %cst {dimension_numbers = #tpu.dot_dimension_numbers<[1], [0], [0], [1], [0, 0, 1, 1], [], []>} : vector<8x32xf32>, vector<32x24xf32>, vector<8x24xf32> -> vector<8x24xf32>
    %7 = vector.broadcast %5 : vector<1x24xf32> to vector<8x24xf32>
    %8 = arith.addf %6, %7 : vector<8x24xf32>
    %9 = vector.extract_strided_slice %8 {offsets = [0, 0], sizes = [8, 8], strides = [1, 1]} : vector<8x24xf32> to vector<8x8xf32>
    %10 = vector.extract_strided_slice %8 {offsets = [0, 8], sizes = [8, 8], strides = [1, 1]} : vector<8x24xf32> to vector<8x8xf32>
    %11 = vector.extract_strided_slice %8 {offsets = [0, 16], sizes = [8, 8], strides = [1, 1]} : vector<8x24xf32> to vector<8x8xf32>
    %cst_8 = arith.constant dense<0.000000e+00> : vector<8x8xf32>
    %12 = tpu.matmul %9, %10, %cst_8 {dimension_numbers = #tpu.dot_dimension_numbers<[1], [1], [0], [0], [0, 0, 1, 0], [], []>} : vector<8x8xf32>, vector<8x8xf32>, vector<8x8xf32> -> vector<8x8xf32>
    %cst_9 = arith.constant 0.353553385 : f32
    %13 = vector.broadcast %cst_9 : f32 to vector<8x8xf32>
    %14 = arith.mulf %12, %13 : vector<8x8xf32>
    %cst_10 = arith.constant dense<0xFF800000> : vector<8xf32>
    %15 = vector.multi_reduction <maximumf>, %14, %cst_10 [1] : vector<8x8xf32> to vector<8xf32>
    %16 = vector.shape_cast %15 : vector<8xf32> to vector<8x1xf32>
    %17 = vector.broadcast %16 : vector<8x1xf32> to vector<8x8xf32>
    %18 = arith.subf %14, %17 : vector<8x8xf32>
    %19 = math.exp %18 : vector<8x8xf32>
    %cst_11 = arith.constant dense<0.000000e+00> : vector<8xf32>
    %20 = vector.multi_reduction <add>, %19, %cst_11 [1] : vector<8x8xf32> to vector<8xf32>
    %21 = vector.shape_cast %20 : vector<8xf32> to vector<8x1xf32>
    %22 = tpu.reciprocal %21 {approx = true} : vector<8x1xf32> -> vector<8x1xf32>
    %23 = arith.mulf %21, %22 : vector<8x1xf32>
    %cst_12 = arith.constant 2.000000e+00 : f32
    %24 = vector.broadcast %cst_12 : f32 to vector<8x1xf32>
    %25 = arith.subf %24, %23 : vector<8x1xf32>
    %26 = arith.mulf %22, %25 : vector<8x1xf32>
    %27 = vector.broadcast %26 : vector<8x1xf32> to vector<8x8xf32>
    %28 = arith.mulf %19, %27 : vector<8x8xf32>
    %c0_13 = arith.constant 0 : index
    %c0_14 = arith.constant 0 : index
    %c0_15 = arith.constant 0 : index
    %c0_16 = arith.constant 0 : index
    %29 = vector.load %arg8[%c0_13, %c0_14, %c0_15, %c0_16] : memref<1x1x8x8xf32, #tpu.memory_space<vmem>>, vector<1x1x8x8xf32>
    %30 = vector.shape_cast %29 : vector<1x1x8x8xf32> to vector<8x8xf32>
    %31 = vector.shape_cast %28 : vector<8x8xf32> to vector<1x1x8x8xf32>
    tpu.vector_store %arg8[%c0_13, %c0_14, %c0_15, %c0_16], %31 {strides = array<i32>} : memref<1x1x8x8xf32, #tpu.memory_space<vmem>>, vector<1x1x8x8xf32>,
    %cst_17 = arith.constant dense<0.000000e+00> : vector<8x8xf32>
    %32 = tpu.matmul %28, %11, %cst_17 {dimension_numbers = #tpu.dot_dimension_numbers<[1], [0], [0], [1], [0, 0, 1, 1], [], []>} : vector<8x8xf32>, vector<8x8xf32>, vector<8x8xf32> -> vector<8x8xf32>
    %c0_18 = arith.constant 0 : index
    %c0_19 = arith.constant 0 : index
    %33 = vector.load %arg5[%c0_18, %c0_19] : memref<8x32xf32, #tpu.memory_space<vmem>>, vector<8x32xf32>
    %cst_20 = arith.constant dense<0.000000e+00> : vector<8x32xf32>
    %34 = tpu.matmul %32, %33, %cst_20 {dimension_numbers = #tpu.dot_dimension_numbers<[1], [0], [0], [1], [0, 0, 1, 1], [], []>} : vector<8x8xf32>, vector<8x32xf32>, vector<8x32xf32> -> vector<8x32xf32>
    %c0_i32 = arith.constant 0 : i32
    %35 = arith.cmpi eq, %arg1, %c0_i32 : i32
    %36 = arith.extui %35 : i1 to i32
    %c0_i32_21 = arith.constant 0 : i32
    %37 = arith.cmpi ne, %36, %c0_i32_21 : i32
    scf.if %37 {
      %cst_27 = arith.constant 0.000000e+00 : f32
      %44 = vector.broadcast %cst_27 : f32 to vector<8x32xf32>
      %c0_28 = arith.constant 0 : index
      %c0_29 = arith.constant 0 : index
      %45 = vector.load %arg9[%c0_28, %c0_29] : memref<8x32xf32, #tpu.memory_space<vmem>>, vector<8x32xf32>
      tpu.vector_store %arg9[%c0_28, %c0_29], %44 {strides = array<i32>} : memref<8x32xf32, #tpu.memory_space<vmem>>, vector<8x32xf32>,
    } else {
    }
    %c0_22 = arith.constant 0 : index
    %c0_23 = arith.constant 0 : index
    %38 = vector.load %arg9[%c0_22, %c0_23] : memref<8x32xf32, #tpu.memory_space<vmem>>, vector<8x32xf32>
    %39 = arith.addf %38, %34 : vector<8x32xf32>
    %c0_24 = arith.constant 0 : index
    %c0_25 = arith.constant 0 : index
    %40 = vector.load %arg9[%c0_24, %c0_25] : memref<8x32xf32, #tpu.memory_space<vmem>>, vector<8x32xf32>
    tpu.vector_store %arg9[%c0_24, %c0_25], %39 {strides = array<i32>} : memref<8x32xf32, #tpu.memory_space<vmem>>, vector<8x32xf32>,
    %c3_i32 = arith.constant 3 : i32
    %41 = arith.cmpi eq, %arg1, %c3_i32 : i32
    %42 = arith.extui %41 : i1 to i32
    %c0_i32_26 = arith.constant 0 : i32
    %43 = arith.cmpi ne, %42, %c0_i32_26 : i32
    scf.if %43 {
      %c0_27 = arith.constant 0 : index
      %c0_28 = arith.constant 0 : index
      %44 = vector.load %arg9[%c0_27, %c0_28] : memref<8x32xf32, #tpu.memory_space<vmem>>, vector<8x32xf32>
      %c0_29 = arith.constant 0 : index
      %c0_30 = arith.constant 0 : index
      %45 = vector.load %arg6[%c0_29, %c0_30] : memref<1x32xf32, #tpu.memory_space<vmem>>, vector<1x32xf32>
      %46 = vector.broadcast %45 : vector<1x32xf32> to vector<8x32xf32>
      %47 = arith.addf %44, %46 : vector<8x32xf32>
      %c0_31 = arith.constant 0 : index
      %c0_32 = arith.constant 0 : index
      %c0_33 = arith.constant 0 : index
      %48 = vector.load %arg7[%c0_31, %c0_32, %c0_33] : memref<1x8x32xf32, #tpu.memory_space<vmem>>, vector<1x8x32xf32>
      %49 = vector.shape_cast %48 : vector<1x8x32xf32> to vector<8x32xf32>
      %50 = vector.shape_cast %47 : vector<8x32xf32> to vector<1x8x32xf32>
      tpu.vector_store %arg7[%c0_31, %c0_32, %c0_33], %50 {strides = array<i32>} : memref<1x8x32xf32, #tpu.memory_space<vmem>>, vector<1x8x32xf32>,
    } else {
    }
    return
  }
  func.func @transform_0(%arg0: i32, %arg1: i32) -> (i32, i32, i32) {
    %c0_i32 = arith.constant 0 : i32
    %c0_i32_0 = arith.constant 0 : i32
    %c0_i32_1 = arith.constant 0 : i32
    return %arg0, %c0_i32, %c0_i32_0 : i32, i32, i32
  }
  func.func @transform_1(%arg0: i32, %arg1: i32) -> (i32, i32, i32) {
    %c0_i32 = arith.constant 0 : i32
    %c0_i32_0 = arith.constant 0 : i32
    %c0_i32_1 = arith.constant 0 : i32
    return %arg1, %c0_i32, %c0_i32_0 : i32, i32, i32
  }
  func.func @transform_2(%arg0: i32, %arg1: i32) -> (i32, i32, i32) {
    %c0_i32 = arith.constant 0 : i32
    %c0_i32_0 = arith.constant 0 : i32
    %c0_i32_1 = arith.constant 0 : i32
    return %arg1, %c0_i32, %c0_i32_0 : i32, i32, i32
  }
  func.func @transform_3(%arg0: i32, %arg1: i32) -> (i32, i32) {
    %c0_i32 = arith.constant 0 : i32
    %c0_i32_0 = arith.constant 0 : i32
    return %arg1, %c0_i32 : i32, i32
  }
  func.func @transform_4(%arg0: i32, %arg1: i32) -> (i32, i32) {
    %c0_i32 = arith.constant 0 : i32
    %c0_i32_0 = arith.constant 0 : i32
    %c0_i32_1 = arith.constant 0 : i32
    return %c0_i32, %c0_i32_0 : i32, i32
  }
  func.func @transform_5(%arg0: i32, %arg1: i32) -> (i32, i32, i32) {
    %c0_i32 = arith.constant 0 : i32
    %c0_i32_0 = arith.constant 0 : i32
    %c0_i32_1 = arith.constant 0 : i32
    return %arg0, %c0_i32, %c0_i32_0 : i32, i32, i32
  }
  func.func @transform_6(%arg0: i32, %arg1: i32) -> (i32, i32, i32, i32) {
    %c0_i32 = arith.constant 0 : i32
    %c0_i32_0 = arith.constant 0 : i32
    %c0_i32_1 = arith.constant 0 : i32
    return %arg0, %arg1, %c0_i32, %c0_i32_0 : i32, i32, i32, i32
  }
}

</mosaic_0001>

<llo_original>
// kernel: tpu_custom_call.1
$region0: #{tpu_custom_call.1}
  #allocation0 [shape = 'u32[]', space=smem, size = 0x4, offset = 0x4, fixed_abs, tag = 'smem constant byte address 0x4 - core index']
  #allocation1 [shape = 'u32[144,128]{1,0:T(1,128)}', space=vmem, size = 0x12000, scoped, tag = 'internal scratch']
  #allocation2 [shape = 'f32[8,32]{1,0:T(8,128)}', space=vmem, size = 0x1000, scoped, tag = 'scratch operand']
  %s0 = inlined_call_operand.vmem [shape: f32[2,8,32], index: 0, kind: input, shape index: {}]
  %s1 = inlined_call_operand.vmem [shape: f32[4,32,24], index: 1, kind: input, shape index: {}]
  %s2 = inlined_call_operand.vmem [shape: f32[4,1,24], index: 2, kind: input, shape index: {}]
  %s3 = inlined_call_operand.vmem [shape: f32[32,32], index: 3, kind: input, shape index: {}]
  %s4 = inlined_call_operand.vmem [shape: f32[1,32], index: 4, kind: input, shape index: {}]
  %s5 = inlined_call_operand.hbm [shape: f32[2,8,32], index: 5, kind: output, shape index: {0}]
  %s6 = inlined_call_operand.hbm [shape: f32[2,4,8,8], index: 6, kind: output, shape index: {1}]
  %7 = xla_tuple %s5, %s6
  %s8 = sld [smem:[#allocation0]]
  $region69: #{tpu_custom_call.1} parent=0
    _
  %s10 = ssub.s32 1, %s8
  %s11 = scalar_select 0, %s10, %s8
  $region1: #{tpu_custom_call.1} parent=0
    #allocation3 [shape = 'u8[8192]{0}', space=vmem, size = 0x2000, scoped, tag = 'output window, operand 0']
    #allocation4 [shape = 's32[2]{0}', space=sflag, size = 0x8, scoped, tag = 'scoped memory for tpu_custom_call.1']
    #allocation5 [shape = 'u8[8192]{0}', space=vmem, size = 0x2000, scoped, tag = 'output window, operand 1']
    #allocation6 [shape = 's32[2]{0}', space=sflag, size = 0x8, scoped, tag = 'scoped memory for tpu_custom_call.1']
    %12 = vsyncpa [#allocation4], 0
    %s13 = scalar_lea.sflag [#allocation4], 1
    %14 = vsyncpa %s13, 0
    %15 = vsyncpa [#allocation6], 0
    %s16 = scalar_lea.sflag [#allocation6], 1
    %17 = vsyncpa %s16, 0
    loop: start=0, step=1, limit=10
    $region2: #{tpu_custom_call.1} parent=1 // loop_pre_header
      _
    $region3: #{tpu_custom_call.1} parent=1 // loop_header
      %s19 = sphi 0, %s23
      %p20 = scmp.ge.s32.totalorder %s19, 10
      %s26 = sphi 0, %s38
      %s27 = sphi 0, %s34
      %s28 = sphi 0, %s26
      %s29 = sphi 0, %s27
      %s30 = sphi 0, %s28
      %s31 = sphi 0, %s29
      %s41 = sphi 0, %s43
      %s44 = sphi 0, %s41
      %s45 = sphi 0, %s44
      %s61 = sphi 0, %s45
      %s67 = sphi 0, %s69
      %s70 = sphi 0, %s67
      %s71 = sphi 0, %s70
      %s87 = sphi 0, %s71
      %s93 = sphi 0, %s95
      %s96 = sphi 0, %s93
      %s97 = sphi 0, %s96
      %s113 = sphi 0, %s97
      %s119 = sphi 0, %s121
      %s122 = sphi 0, %s119
      %s123 = sphi 0, %s122
      %s139 = sphi 0, %s123
      %s143 = sphi 0, %s143
      %s145 = sphi 0, %s143
      %s146 = sphi 0, %s145
      %s160 = sphi 0, %s146
      %s166 = sphi 0, %s168
      %s169 = sphi 0, %s166
      %s170 = sphi 0, %s169
      %s186 = sphi 0, %s170
      %s194 = sphi 0, %s196
      %s197 = sphi 0, %s194
      %s198 = sphi 0, %s197
      %s214 = sphi 0, %s198
    $region4: #{tpu_custom_call.1} parent=1 // loop_header_branch
      %22 = sbr.rel (%p20) target = $region8
    $region5: #{tpu_custom_call.1} parent=1 // loop_body
      %s24 = ssub.s32 %s19, 1
      %s25 = ssub.s32 %s19, 2
      %s32 = sadd.s32 1, %s27
      %p33 = scmp.ge.s32.totalorder %s32, 4
      %s34 = scalar_select %p33, 0, %s32
      %s35 = sadd.s32 1, %s26
      %s36 = scalar_select %p33, %s35, %s26
      %p37 = scmp.ge.s32.totalorder %s36, 2
      %s38 = scalar_select %p37, 0, %s36
      %s39 = ssub.s32 %s26, %s38
      %p40 = scmp.eq.s32.totalorder %s39, 0
      %s42 = sadd.s32 %s41, 1
      %s43 = scalar_select %p40, %s41, %s42
      %p46 = pneg %p40
      %p47 = scmp.eq.s32.totalorder %s19, 7
      %p48 = por %p46, %p47
      %p49 = scmp.ne.s32.totalorder %s41, %s44
      %p50 = scmp.eq.s32.totalorder %s19, 0
      %p51 = por %p49, %p50
      %p52 = scmp.ne.s32.totalorder %s41, %s44
      %p53 = scmp.eq.s32.totalorder %s24, 7
      %p54 = por %p52, %p53
      %p55 = scmp.ne.s32.totalorder %s44, %s45
      %p56 = scmp.eq.s32.totalorder %s24, 0
      %p57 = por %p55, %p56
      %p58 = scmp.ne.s32.totalorder %s44, %s45
      %p59 = scmp.eq.s32.totalorder %s25, 7
      %p60 = por %p58, %p59
      %p62 = scmp.ne.s32.totalorder %s45, %s61
      %p63 = scmp.eq.s32.totalorder %s25, 0
      %p64 = por %p62, %p63
      %s65 = ssub.s32 %s27, %s34
      %p66 = scmp.eq.s32.totalorder %s65, 0
      %s68 = sadd.s32 %s67, 1
      %s69 = scalar_select %p66, %s67, %s68
      %p72 = pneg %p66
      %p73 = scmp.eq.s32.totalorder %s19, 7
      %p74 = por %p72, %p73
      %p75 = scmp.ne.s32.totalorder %s67, %s70
      %p76 = scmp.eq.s32.totalorder %s19, 0
      %p77 = por %p75, %p76
      %p78 = scmp.ne.s32.totalorder %s67, %s70
      %p79 = scmp.eq.s32.totalorder %s24, 7
      %p80 = por %p78, %p79
      %p81 = scmp.ne.s32.totalorder %s70, %s71
      %p82 = scmp.eq.s32.totalorder %s24, 0
      %p83 = por %p81, %p82
      %p84 = scmp.ne.s32.totalorder %s70, %s71
      %p85 = scmp.eq.s32.totalorder %s25, 7
      %p86 = por %p84, %p85
      %p88 = scmp.ne.s32.totalorder %s71, %s87
      %p89 = scmp.eq.s32.totalorder %s25, 0
      %p90 = por %p88, %p89
      %s91 = ssub.s32 %s27, %s34
      %p92 = scmp.eq.s32.totalorder %s91, 0
      %s94 = sadd.s32 %s93, 1
      %s95 = scalar_select %p92, %s93, %s94
      %p98 = pneg %p92
      %p99 = scmp.eq.s32.totalorder %s19, 7
      %p100 = por %p98, %p99
      %p101 = scmp.ne.s32.totalorder %s93, %s96
      %p102 = scmp.eq.s32.totalorder %s19, 0
      %p103 = por %p101, %p102
      %p104 = scmp.ne.s32.totalorder %s93, %s96
      %p105 = scmp.eq.s32.totalorder %s24, 7
      %p106 = por %p104, %p105
      %p107 = scmp.ne.s32.totalorder %s96, %s97
      %p108 = scmp.eq.s32.totalorder %s24, 0
      %p109 = por %p107, %p108
      %p110 = scmp.ne.s32.totalorder %s96, %s97
      %p111 = scmp.eq.s32.totalorder %s25, 7
      %p112 = por %p110, %p111
      %p114 = scmp.ne.s32.totalorder %s97, %s113
      %p115 = scmp.eq.s32.totalorder %s25, 0
      %p116 = por %p114, %p115
      %s117 = ssub.s32 %s27, %s34
      %p118 = scmp.eq.s32.totalorder %s117, 0
      %s120 = sadd.s32 %s119, 1
      %s121 = scalar_select %p118, %s119, %s120
      %p124 = pneg %p118
      %p125 = scmp.eq.s32.totalorder %s19, 7
      %p126 = por %p124, %p125
      %p127 = scmp.ne.s32.totalorder %s119, %s122
      %p128 = scmp.eq.s32.totalorder %s19, 0
      %p129 = por %p127, %p128
      %p130 = scmp.ne.s32.totalorder %s119, %s122
      %p131 = scmp.eq.s32.totalorder %s24, 7
      %p132 = por %p130, %p131
      %p133 = scmp.ne.s32.totalorder %s122, %s123
      %p134 = scmp.eq.s32.totalorder %s24, 0
      %p135 = por %p133, %p134
      %p136 = scmp.ne.s32.totalorder %s122, %s123
      %p137 = scmp.eq.s32.totalorder %s25, 7
      %p138 = por %p136, %p137
      %p140 = scmp.ne.s32.totalorder %s123, %s139
      %p141 = scmp.eq.s32.totalorder %s25, 0
      %p142 = por %p140, %p141
      %s144 = sadd.s32 %s143, 1
      %p147 = scmp.eq.s32.totalorder %s19, 7
      %p148 = scmp.ne.s32.totalorder %s143, %s145
      %p149 = scmp.eq.s32.totalorder %s19, 0
      %p150 = por %p148, %p149
      %p151 = scmp.ne.s32.totalorder %s143, %s145
      %p152 = scmp.eq.s32.totalorder %s24, 7
      %p153 = por %p151, %p152
      %p154 = scmp.ne.s32.totalorder %s145, %s146
      %p155 = scmp.eq.s32.totalorder %s24, 0
      %p156 = por %p154, %p155
      %p157 = scmp.ne.s32.totalorder %s145, %s146
      %p158 = scmp.eq.s32.totalorder %s25, 7
      %p159 = por %p157, %p158
      %p161 = scmp.ne.s32.totalorder %s146, %s160
      %p162 = scmp.eq.s32.totalorder %s25, 0
      %p163 = por %p161, %p162
      %s164 = ssub.s32 %s26, %s38
      %p165 = scmp.eq.s32.totalorder %s164, 0
      %s167 = sadd.s32 %s166, 1
      %s168 = scalar_select %p165, %s166, %s167
      %p171 = pneg %p165
      %p172 = scmp.eq.s32.totalorder %s19, 7
      %p173 = por %p171, %p172
      %p174 = scmp.ne.s32.totalorder %s166, %s169
      %p175 = scmp.eq.s32.totalorder %s19, 0
      %p176 = por %p174, %p175
      %p177 = scmp.ne.s32.totalorder %s166, %s169
      %p178 = scmp.eq.s32.totalorder %s24, 7
      %p179 = por %p177, %p178
      %p180 = scmp.ne.s32.totalorder %s169, %s170
      %p181 = scmp.eq.s32.totalorder %s24, 0
      %p182 = por %p180, %p181
      %p183 = scmp.ne.s32.totalorder %s169, %s170
      %p184 = scmp.eq.s32.totalorder %s25, 7
      %p185 = por %p183, %p184
      %p187 = scmp.ne.s32.totalorder %s170, %s186
      %p188 = scmp.eq.s32.totalorder %s25, 0
      %p189 = por %p187, %p188
      %s190 = ssub.s32 %s26, %s38
      %s191 = ssub.s32 %s27, %s34
      %s192 = sor.u32 %s190, %s191
      %p193 = scmp.eq.s32.totalorder %s192, 0
      %s195 = sadd.s32 %s194, 1
      %s196 = scalar_select %p193, %s194, %s195
      %p199 = pneg %p193
      %p200 = scmp.eq.s32.totalorder %s19, 7
      %p201 = por %p199, %p200
      %p202 = scmp.ne.s32.totalorder %s194, %s197
      %p203 = scmp.eq.s32.totalorder %s19, 0
      %p204 = por %p202, %p203
      %p205 = scmp.ne.s32.totalorder %s194, %s197
      %p206 = scmp.eq.s32.totalorder %s24, 7
      %p207 = por %p205, %p206
      %p208 = scmp.ne.s32.totalorder %s197, %s198
      %p209 = scmp.eq.s32.totalorder %s24, 0
      %p210 = por %p208, %p209
      %p211 = scmp.ne.s32.totalorder %s197, %s198
      %p212 = scmp.eq.s32.totalorder %s25, 7
      %p213 = por %p211, %p212
      %p215 = scmp.ne.s32.totalorder %s198, %s214
      %p216 = scmp.eq.s32.totalorder %s25, 0
      %p217 = por %p215, %p216
      %p218 = scmp.le.s32.totalorder 1, %s19
      %p219 = scmp.lt.s32.totalorder %s19, 9
      %p220 = pnand %p218, %p219
      %p221 = pneg %p220
      // Predicated region
      $region9: #{tpu_custom_call.1} parent=5 // pred_check
        _
      $region10: #{tpu_custom_call.1} parent=5 // pred_check_branch
        %223 = sbr.rel (%p220) target = $region12
      $region11: #{tpu_custom_call.1} parent=5 // pred_region
        %s224 = ssub.s32 %s19, 1
        // Predicated region
        $region13: #{tpu_custom_call.1} parent=11 // pred_check
          %p225 = pneg %p156
        $region14: #{tpu_custom_call.1} parent=11 // pred_check_branch
          %227 = sbr.rel (%p225) target = $region16
        $region15: #{tpu_custom_call.1} parent=11 // pred_region
          _
        $region16: #{tpu_custom_call.1} parent=11 // pred_fallthru
          _
      $region12: #{tpu_custom_call.1} parent=5 // pred_fallthru
        _
      %p228 = scmp.lt.s32.totalorder %s19, 8
      // Predicated region
      $region17: #{tpu_custom_call.1} parent=5 // pred_check
        %p229 = pneg %p228
      $region18: #{tpu_custom_call.1} parent=5 // pred_check_branch
        %231 = sbr.rel (%p229) target = $region20
      $region19: #{tpu_custom_call.1} parent=5 // pred_region
        // Predicated region
        $region21: #{tpu_custom_call.1} parent=19 // pred_check
          %p232 = pneg %p51
        $region22: #{tpu_custom_call.1} parent=19 // pred_check_branch
          %234 = sbr.rel (%p232) target = $region24
        $region23: #{tpu_custom_call.1} parent=19 // pred_region
          %p235 = scmp.lt.s32.totalorder %s26, 1
          %s236 = scalar_select %p235, %s26, 1
          %s237 = smul.addr %s236, 8
          %s238 = scalar_lea.vmem %s0, %s237
        $region24: #{tpu_custom_call.1} parent=19 // pred_fallthru
          _
        // Predicated region
        $region25: #{tpu_custom_call.1} parent=19 // pred_check
          %p239 = pneg %p77
        $region26: #{tpu_custom_call.1} parent=19 // pred_check_branch
          %241 = sbr.rel (%p239) target = $region28
        $region27: #{tpu_custom_call.1} parent=19 // pred_region
          %p242 = scmp.lt.s32.totalorder %s27, 3
          %s243 = scalar_select %p242, %s27, 3
          %s244 = smul.addr %s243, 4
          %s245 = smul.addr %s244, 8
          %s246 = scalar_lea.vmem %s1, %s245
        $region28: #{tpu_custom_call.1} parent=19 // pred_fallthru
          _
        // Predicated region
        $region29: #{tpu_custom_call.1} parent=19 // pred_check
          %p247 = pneg %p103
        $region30: #{tpu_custom_call.1} parent=19 // pred_check_branch
          %249 = sbr.rel (%p247) target = $region32
        $region31: #{tpu_custom_call.1} parent=19 // pred_region
          %p250 = scmp.lt.s32.totalorder %s27, 3
          %s251 = scalar_select %p250, %s27, 3
          %s252 = scalar_lea.vmem %s2, %s251
        $region32: #{tpu_custom_call.1} parent=19 // pred_fallthru
          _
        // Predicated region
        $region33: #{tpu_custom_call.1} parent=19 // pred_check
          %p253 = pneg %p129
        $region34: #{tpu_custom_call.1} parent=19 // pred_check_branch
          %255 = sbr.rel (%p253) target = $region36
        $region35: #{tpu_custom_call.1} parent=19 // pred_region
          %p256 = scmp.lt.s32.totalorder %s27, 3
          %s257 = scalar_select %p256, %s27, 3
          %s258 = smul.addr %s257, 8
          %s259 = scalar_lea.vmem %s3, %s258
        $region36: #{tpu_custom_call.1} parent=19 // pred_fallthru
          _
      $region20: #{tpu_custom_call.1} parent=5 // pred_fallthru
        _
      %p260 = scmp.le.s32.totalorder 1, %s19
      %p261 = scmp.lt.s32.totalorder %s19, 9
      %p262 = pnand %p260, %p261
      %p263 = pneg %p262
      // Predicated region
      $region37: #{tpu_custom_call.1} parent=5 // pred_check
        _
      $region38: #{tpu_custom_call.1} parent=5 // pred_check_branch
        %265 = sbr.rel (%p262) target = $region40
      $region39: #{tpu_custom_call.1} parent=5 // pred_region
        %s266 = ssub.s32 %s19, 1
        %p267 = scmp.lt.s32.totalorder %s28, 1
        %s268 = scalar_select %p267, %s28, 1
        %s269 = smul.addr %s268, 8
        %s270 = scalar_lea.vmem %s0, %s269
        %p271 = pneg %p57
        %p272 = pneg %p54
        %p273 = scmp.lt.s32.totalorder %s29, 3
        %s274 = scalar_select %p273, %s29, 3
        %s275 = smul.addr %s274, 4
        %s276 = smul.addr %s275, 8
        %s277 = scalar_lea.vmem %s1, %s276
        %p278 = pneg %p83
        %p279 = pneg %p80
        %p280 = scmp.lt.s32.totalorder %s29, 3
        %s281 = scalar_select %p280, %s29, 3
        %s282 = scalar_lea.vmem %s2, %s281
        %p283 = pneg %p109
        %p284 = pneg %p106
        %p285 = scmp.lt.s32.totalorder %s29, 3
        %s286 = scalar_select %p285, %s29, 3
        %s287 = smul.addr %s286, 8
        %s288 = scalar_lea.vmem %s3, %s287
        %p289 = pneg %p135
        %p290 = pneg %p132
        %p291 = pneg %p156
        %p292 = pneg %p153
        %p293 = pneg %p182
        %p294 = pneg %p179
        %s295 = sand.u32 %s169, 1
        %s296 = scalar_lea.sflag [#allocation4], %s295
        %s297 = sand.u32 %s169, 1
        %s298 = smul.addr %s297, 8
        %s299 = scalar_lea.vmem [#allocation3], %s298
        %p300 = pneg %p210
        %p301 = pneg %p207
        %s302 = sand.u32 %s197, 1
        %s303 = scalar_lea.sflag [#allocation6], %s302
        %s304 = sand.u32 %s197, 1
        %s305 = smul.addr %s304, 8
        %s306 = scalar_lea.vmem [#allocation5], %s305
        %p307 = scmp.lt.s32.totalorder %s28, 1
        %s308 = scalar_select %p307, %s28, 1
        %s309 = smul.addr %s308, 8
        %s310 = scalar_lea.vmem %s0, %s309
        %p311 = scmp.lt.s32.totalorder %s29, 3
        %s312 = scalar_select %p311, %s29, 3
        %s313 = smul.addr %s312, 4
        %s314 = smul.addr %s313, 8
        %s315 = scalar_lea.vmem %s1, %s314
        %p316 = scmp.lt.s32.totalorder %s29, 3
        %s317 = scalar_select %p316, %s29, 3
        %s318 = scalar_lea.vmem %s2, %s317
        %p319 = scmp.lt.s32.totalorder %s29, 3
        %s320 = scalar_select %p319, %s29, 3
        %s321 = smul.addr %s320, 8
        %s322 = scalar_lea.vmem %s3, %s321
        %v323 = vld [vmem:[%s310] sm:$0xff]
        %v324 = vld [vmem:[%s315] sm:$0xff]
        %v325 = vld [vmem:[%s315 + $0x8] sm:$0xff]
        %v326 = vld [vmem:[%s315 + $0x10] sm:$0xff]
        %v327 = vld [vmem:[%s315 + $0x18] sm:$0xff]
        %v328 = vld [vmem:[%s318] sm:$0x1]
        %v330 = vlaneseq
        %v331 = vshrl.u32 %v330, 7
        %v332 = vsub.s32 0, %v331
        %v333 = vrot.slane %v328, %v332
        %vm335 = vcmask 261120
        %v337 = vsel %vm335, %v323, 0
        %339 = vmatprep.subr.mxu0 0.0
        %340 = vmatpush1.msra.mxu0 %v324
        %341 = vmatprep.subr.mxu0 0.0
        %342 = vmatpush1.msra.mxu0 %v325
        %343 = vmatprep.subr.mxu0 0.0
        %344 = vmatpush1.msra.mxu0 %v326
        %345 = vmatprep.subr.mxu0 0.0
        %346 = vmatpush1.msra.mxu0 %v327
        %347 = vmatprep.subr.mxu0 0.0
        %348 = vmatpush1.msra.mxu0 0.0
        %349 = vmatprep.subr.mxu0 0.0
        %350 = vmatpush1.msra.mxu0 0.0
        %351 = vmatprep.subr.mxu0 0.0
        %352 = vmatpush1.msra.mxu0 0.0
        %353 = vmatprep.subr.mxu0 0.0
        %354 = vmatpush1.msra.mxu0 0.0
        %355 = vmatprep.subr.mxu0 0.0
        %356 = vmatpush1.msra.mxu0 0.0
        %357 = vmatprep.subr.mxu0 0.0
        %358 = vmatpush1.msra.mxu0 0.0
        %359 = vmatprep.subr.mxu0 0.0
        %360 = vmatpush1.msra.mxu0 0.0
        %361 = vmatprep.subr.mxu0 0.0
        %362 = vmatpush1.msra.mxu0 0.0
        %363 = vmatprep.subr.mxu0 0.0
        %364 = vmatpush1.msra.mxu0 0.0
        %365 = vmatprep.subr.mxu0 0.0
        %366 = vmatpush1.msra.mxu0 0.0
        %367 = vmatprep.subr.mxu0 0.0
        %368 = vmatpush1.msra.mxu0 0.0
        %369 = vmatprep.subr.mxu0 0.0
        %370 = vmatpush1.msra.mxu0 0.0
        %371 = vmatprep.subr.mxu0 0.0
        %372 = vmatpush1.msra.mxu0 0.0
        %373 = vmatprep.subr.mxu0 0.0
        %374 = vmatpush1.msra.mxu0 0.0
        %375 = vmatprep.subr.mxu0 0.0
        %376 = vmatpush1.msra.mxu0 0.0
        %377 = vmatprep.subr.mxu0 0.0
        %378 = vmatpush1.msra.mxu0 0.0
        %379 = vmatprep.subr.mxu0 0.0
        %380 = vmatpush1.msra.mxu0 0.0
        %381 = vmatprep.subr.mxu0 0.0
        %382 = vmatpush1.msra.mxu0 0.0
        %383 = vmatprep.subr.mxu0 0.0
        %384 = vmatpush1.msra.mxu0 0.0
        %385 = vmatprep.subr.mxu0 0.0
        %386 = vmatpush1.msra.mxu0 0.0
        %387 = vmatprep.subr.mxu0 0.0
        %388 = vmatpush1.msra.mxu0 0.0
        %389 = vmatprep.subr.mxu0 0.0
        %390 = vmatpush1.msra.mxu0 0.0
        %391 = vmatprep.subr.mxu0 0.0
        %392 = vmatpush1.msra.mxu0 0.0
        %393 = vmatprep.subr.mxu0 0.0
        %394 = vmatpush1.msra.mxu0 0.0
        %395 = vmatprep.subr.mxu0 0.0
        %396 = vmatpush1.msra.mxu0 0.0
        %397 = vmatprep.subr.mxu0 0.0
        %398 = vmatpush1.msra.mxu0 0.0
        %399 = vmatprep.subr.mxu0 0.0
        %400 = vmatpush1.msra.mxu0 0.0
        %401 = vmatprep.subr.mxu0 0.0
        %402 = vmatpush1.msra.mxu0 0.0
        %403 = vmatprep.mubr.f32.mxu0 0.0
        %404 = vmatmul.mubr.f32.gmra.mrb[0].mxu0 %v337
        %v405 = vpop.f32.mrb[0].mxu0
        %v406 = vadd.f32 %v333, %v405
        %v407 = vpop.f32.mrb[0].mxu0
        %408 = vdwg.mxu0
        %410 = vrot.lane.b32.xlu0 %v406, 120
        %v411 = vpop.permute.xlu0 %410
        %vm412 = vcmask 64512
        %v413 = vsel %vm412, %v406, 0
        %v415 = vsel %vm412, %v411, 0
        %417 = vmatprep.subr.mxu0 0.0
        %418 = vmatpush1.xpose.msra.mxu0 %v415
        %419 = vmatprep.subr.mxu0 0.0
        %420 = vmatpush1.xpose.msra.mxu0 0.0
        %421 = vmatprep.subr.mxu0 0.0
        %422 = vmatpush1.xpose.msra.mxu0 0.0
        %423 = vmatprep.subr.mxu0 0.0
        %424 = vmatpush1.xpose.msra.mxu0 0.0
        %425 = vmatprep.subr.mxu0 0.0
        %426 = vmatpush1.xpose.msra.mxu0 0.0
        %427 = vmatprep.subr.mxu0 0.0
        %428 = vmatpush1.xpose.msra.mxu0 0.0
        %429 = vmatprep.subr.mxu0 0.0
        %430 = vmatpush1.xpose.msra.mxu0 0.0
        %431 = vmatprep.subr.mxu0 0.0
        %432 = vmatpush1.xpose.msra.mxu0 0.0
        %433 = vmatprep.subr.mxu0 0.0
        %434 = vmatpush1.xpose.msra.mxu0 0.0
        %435 = vmatprep.subr.mxu0 0.0
        %436 = vmatpush1.xpose.msra.mxu0 0.0
        %437 = vmatprep.subr.mxu0 0.0
        %438 = vmatpush1.xpose.msra.mxu0 0.0
        %439 = vmatprep.subr.mxu0 0.0
        %440 = vmatpush1.xpose.msra.mxu0 0.0
        %441 = vmatprep.subr.mxu0 0.0
        %442 = vmatpush1.xpose.msra.mxu0 0.0
        %443 = vmatprep.subr.mxu0 0.0
        %444 = vmatpush1.xpose.msra.mxu0 0.0
        %445 = vmatprep.subr.mxu0 0.0
        %446 = vmatpush1.xpose.msra.mxu0 0.0
        %447 = vmatprep.subr.mxu0 0.0
        %448 = vmatpush1.xpose.msra.mxu0 0.0
        %449 = vmatprep.subr.mxu0 0.0
        %450 = vmatpush1.xpose.msra.mxu0 0.0
        %451 = vmatprep.subr.mxu0 0.0
        %452 = vmatpush1.xpose.msra.mxu0 0.0
        %453 = vmatprep.subr.mxu0 0.0
        %454 = vmatpush1.xpose.msra.mxu0 0.0
        %455 = vmatprep.subr.mxu0 0.0
        %456 = vmatpush1.xpose.msra.mxu0 0.0
        %457 = vmatprep.subr.mxu0 0.0
        %458 = vmatpush1.xpose.msra.mxu0 0.0
        %459 = vmatprep.subr.mxu0 0.0
        %460 = vmatpush1.xpose.msra.mxu0 0.0
        %461 = vmatprep.subr.mxu0 0.0
        %462 = vmatpush1.xpose.msra.mxu0 0.0
        %463 = vmatprep.subr.mxu0 0.0
        %464 = vmatpush1.xpose.msra.mxu0 0.0
        %465 = vmatprep.subr.mxu0 0.0
        %466 = vmatpush1.xpose.msra.mxu0 0.0
        %467 = vmatprep.subr.mxu0 0.0
        %468 = vmatpush1.xpose.msra.mxu0 0.0
        %469 = vmatprep.subr.mxu0 0.0
        %470 = vmatpush1.xpose.msra.mxu0 0.0
        %471 = vmatprep.subr.mxu0 0.0
        %472 = vmatpush1.xpose.msra.mxu0 0.0
        %473 = vmatprep.subr.mxu0 0.0
        %474 = vmatpush1.xpose.msra.mxu0 0.0
        %475 = vmatprep.subr.mxu0 0.0
        %476 = vmatpush1.xpose.msra.mxu0 0.0
        %477 = vmatprep.subr.mxu0 0.0
        %478 = vmatpush1.xpose.msra.mxu0 0.0
        %479 = vmatprep.subr.mxu0 0.0
        %480 = vmatpush1.xpose.msra.mxu0 0.0
        %481 = vmatprep.mubr.f32.mxu0 0.0
        %482 = vmatmul.mubr.f32.gmra.mrb[0].mxu0 %v413
        %v483 = vpop.f32.mrb[0].mxu0
        %v484 = vadd.f32 0.0, %v483
        %v485 = vpop.f32.mrb[0].mxu0
        %486 = vdwg.mxu0
        %v487 = vmul.f32 %v484, 0.35355338
        %v488 = vsel %vm412, %v487, -inf
        %489 = vmax.xlane.f32.xlu0 %v488
        %v490 = vpop.xlane.xlu0 %489
        %v491 = vsub.f32 %v487, %v490
        %v492 = vmul.f32 %v491, 1.442695
        %v493 = vpow.pop %v492
        %v494 = vsel %vm412, %v493, 0.0
        %495 = vadd.xlane.f32.xlu0 %v494
        %v496 = vpop.xlane.xlu0 %495
        %v497 = vrcp.pop %v496
        %v498 = vmul.f32 %v496, %v497
        %v499 = vsub.f32 2.0, %v498
        %v500 = vmul.f32 %v497, %v499
        %v501 = vmul.f32 %v493, %v500
        %502 = vst.msk [vmem:[%s306] sm:$0xff] %vm412, %v501
        %503 = vrot.lane.b32.xlu0 %v406, 112
        %v504 = vpop.permute.xlu0 %503
        %v507 = vsel %vm412, %v501, 0
        %509 = vmatprep.subr.mxu0 0.0
        %510 = vmatpush1.msra.mxu0 %v504
        %511 = vmatprep.subr.mxu0 0.0
        %512 = vmatpush1.msra.mxu0 0.0
        %513 = vmatprep.subr.mxu0 0.0
        %514 = vmatpush1.msra.mxu0 0.0
        %515 = vmatprep.subr.mxu0 0.0
        %516 = vmatpush1.msra.mxu0 0.0
        %517 = vmatprep.subr.mxu0 0.0
        %518 = vmatpush1.msra.mxu0 0.0
        %519 = vmatprep.subr.mxu0 0.0
        %520 = vmatpush1.msra.mxu0 0.0
        %521 = vmatprep.subr.mxu0 0.0
        %522 = vmatpush1.msra.mxu0 0.0
        %523 = vmatprep.subr.mxu0 0.0
        %524 = vmatpush1.msra.mxu0 0.0
        %525 = vmatprep.subr.mxu0 0.0
        %526 = vmatpush1.msra.mxu0 0.0
        %527 = vmatprep.subr.mxu0 0.0
        %528 = vmatpush1.msra.mxu0 0.0
        %529 = vmatprep.subr.mxu0 0.0
        %530 = vmatpush1.msra.mxu0 0.0
        %531 = vmatprep.subr.mxu0 0.0
        %532 = vmatpush1.msra.mxu0 0.0
        %533 = vmatprep.subr.mxu0 0.0
        %534 = vmatpush1.msra.mxu0 0.0
        %535 = vmatprep.subr.mxu0 0.0
        %536 = vmatpush1.msra.mxu0 0.0
        %537 = vmatprep.subr.mxu0 0.0
        %538 = vmatpush1.msra.mxu0 0.0
        %539 = vmatprep.subr.mxu0 0.0
        %540 = vmatpush1.msra.mxu0 0.0
        %541 = vmatprep.subr.mxu0 0.0
        %542 = vmatpush1.msra.mxu0 0.0
        %543 = vmatprep.subr.mxu0 0.0
        %544 = vmatpush1.msra.mxu0 0.0
        %545 = vmatprep.subr.mxu0 0.0
        %546 = vmatpush1.msra.mxu0 0.0
        %547 = vmatprep.subr.mxu0 0.0
        %548 = vmatpush1.msra.mxu0 0.0
        %549 = vmatprep.subr.mxu0 0.0
        %550 = vmatpush1.msra.mxu0 0.0
        %551 = vmatprep.subr.mxu0 0.0
        %552 = vmatpush1.msra.mxu0 0.0
        %553 = vmatprep.subr.mxu0 0.0
        %554 = vmatpush1.msra.mxu0 0.0
        %555 = vmatprep.subr.mxu0 0.0
        %556 = vmatpush1.msra.mxu0 0.0
        %557 = vmatprep.subr.mxu0 0.0
        %558 = vmatpush1.msra.mxu0 0.0
        %559 = vmatprep.subr.mxu0 0.0
        %560 = vmatpush1.msra.mxu0 0.0
        %561 = vmatprep.subr.mxu0 0.0
        %562 = vmatpush1.msra.mxu0 0.0
        %563 = vmatprep.subr.mxu0 0.0
        %564 = vmatpush1.msra.mxu0 0.0
        %565 = vmatprep.subr.mxu0 0.0
        %566 = vmatpush1.msra.mxu0 0.0
        %567 = vmatprep.subr.mxu0 0.0
        %568 = vmatpush1.msra.mxu0 0.0
        %569 = vmatprep.subr.mxu0 0.0
        %570 = vmatpush1.msra.mxu0 0.0
        %571 = vmatprep.subr.mxu0 0.0
        %572 = vmatpush1.msra.mxu0 0.0
        %573 = vmatprep.mubr.f32.mxu0 0.0
        %574 = vmatmul.mubr.f32.gmra.mrb[0].mxu0 %v507
        %v575 = vpop.f32.mrb[0].mxu0
        %v576 = vadd.f32 0.0, %v575
        %v577 = vpop.f32.mrb[0].mxu0
        %578 = vdwg.mxu0
        %v579 = vld [vmem:[%s322] sm:$0xff]
        %v581 = vsel %vm412, %v576, 0
        %583 = vmatprep.subr.mxu0 0.0
        %584 = vmatpush1.msra.mxu0 %v579
        %585 = vmatprep.subr.mxu0 0.0
        %586 = vmatpush1.msra.mxu0 0.0
        %587 = vmatprep.subr.mxu0 0.0
        %588 = vmatpush1.msra.mxu0 0.0
        %589 = vmatprep.subr.mxu0 0.0
        %590 = vmatpush1.msra.mxu0 0.0
        %591 = vmatprep.subr.mxu0 0.0
        %592 = vmatpush1.msra.mxu0 0.0
        %593 = vmatprep.subr.mxu0 0.0
        %594 = vmatpush1.msra.mxu0 0.0
        %595 = vmatprep.subr.mxu0 0.0
        %596 = vmatpush1.msra.mxu0 0.0
        %597 = vmatprep.subr.mxu0 0.0
        %598 = vmatpush1.msra.mxu0 0.0
        %599 = vmatprep.subr.mxu0 0.0
        %600 = vmatpush1.msra.mxu0 0.0
        %601 = vmatprep.subr.mxu0 0.0
        %602 = vmatpush1.msra.mxu0 0.0
        %603 = vmatprep.subr.mxu0 0.0
        %604 = vmatpush1.msra.mxu0 0.0
        %605 = vmatprep.subr.mxu0 0.0
        %606 = vmatpush1.msra.mxu0 0.0
        %607 = vmatprep.subr.mxu0 0.0
        %608 = vmatpush1.msra.mxu0 0.0
        %609 = vmatprep.subr.mxu0 0.0
        %610 = vmatpush1.msra.mxu0 0.0
        %611 = vmatprep.subr.mxu0 0.0
        %612 = vmatpush1.msra.mxu0 0.0
        %613 = vmatprep.subr.mxu0 0.0
        %614 = vmatpush1.msra.mxu0 0.0
        %615 = vmatprep.subr.mxu0 0.0
        %616 = vmatpush1.msra.mxu0 0.0
        %617 = vmatprep.subr.mxu0 0.0
        %618 = vmatpush1.msra.mxu0 0.0
        %619 = vmatprep.subr.mxu0 0.0
        %620 = vmatpush1.msra.mxu0 0.0
        %621 = vmatprep.subr.mxu0 0.0
        %622 = vmatpush1.msra.mxu0 0.0
        %623 = vmatprep.subr.mxu0 0.0
        %624 = vmatpush1.msra.mxu0 0.0
        %625 = vmatprep.subr.mxu0 0.0
        %626 = vmatpush1.msra.mxu0 0.0
        %627 = vmatprep.subr.mxu0 0.0
        %628 = vmatpush1.msra.mxu0 0.0
        %629 = vmatprep.subr.mxu0 0.0
        %630 = vmatpush1.msra.mxu0 0.0
        %631 = vmatprep.subr.mxu0 0.0
        %632 = vmatpush1.msra.mxu0 0.0
        %633 = vmatprep.subr.mxu0 0.0
        %634 = vmatpush1.msra.mxu0 0.0
        %635 = vmatprep.subr.mxu0 0.0
        %636 = vmatpush1.msra.mxu0 0.0
        %637 = vmatprep.subr.mxu0 0.0
        %638 = vmatpush1.msra.mxu0 0.0
        %639 = vmatprep.subr.mxu0 0.0
        %640 = vmatpush1.msra.mxu0 0.0
        %641 = vmatprep.subr.mxu0 0.0
        %642 = vmatpush1.msra.mxu0 0.0
        %643 = vmatprep.subr.mxu0 0.0
        %644 = vmatpush1.msra.mxu0 0.0
        %645 = vmatprep.subr.mxu0 0.0
        %646 = vmatpush1.msra.mxu0 0.0
        %647 = vmatprep.mubr.f32.mxu0 0.0
        %648 = vmatmul.mubr.f32.gmra.mrb[0].mxu0 %v581
        %v649 = vpop.f32.mrb[0].mxu0
        %v650 = vadd.f32 0.0, %v649
        %v651 = vpop.f32.mrb[0].mxu0
        %652 = vdwg.mxu0
        %p653 = scmp.eq.s32.totalorder %s29, 0
        // Predicated region
        $region41: #{tpu_custom_call.1} parent=39 // pred_check
          %p654 = pneg %p653
        $region42: #{tpu_custom_call.1} parent=39 // pred_check_branch
          %656 = sbr.rel (%p654) target = $region44
        $region43: #{tpu_custom_call.1} parent=39 // pred_region
          %657 = vst.msk [vmem:[#allocation2] sm:$0xff] %vm335, 0.0
        $region44: #{tpu_custom_call.1} parent=39 // pred_fallthru
          _
        %v658 = vld [vmem:[#allocation2] sm:$0xff]
        %v659 = vadd.f32 %v658, %v650
        %660 = vst.msk [vmem:[#allocation2] sm:$0xff] %vm335, %v659
        %p661 = scmp.eq.s32.totalorder %s29, 3
        // Predicated region
        $region45: #{tpu_custom_call.1} parent=39 // pred_check
          %p662 = pneg %p661
        $region46: #{tpu_custom_call.1} parent=39 // pred_check_branch
          %664 = sbr.rel (%p662) target = $region48
        $region47: #{tpu_custom_call.1} parent=39 // pred_region
          %v665 = vld [vmem:[#allocation2] sm:$0xff]
          %v666 = vld [vmem:[%s4] sm:$0x1]
          %v668 = vlaneseq
          %v669 = vshrl.u32 %v668, 7
          %v670 = vsub.s32 0, %v669
          %v671 = vrot.slane %v666, %v670
          %v673 = vadd.f32 %v665, %v671
          %674 = vst.msk [vmem:[%s299] sm:$0xff] %vm335, %v673
        $region48: #{tpu_custom_call.1} parent=39 // pred_fallthru
          _
        %s675 = sand.u32 %s169, 1
        %s676 = scalar_lea.sflag [#allocation4], %s675
        %s677 = sand.u32 %s169, 1
        %s678 = smul.addr %s677, 8
        %s679 = scalar_lea.vmem [#allocation3], %s678
        %s680 = sand.u32 %s197, 1
        %s681 = scalar_lea.sflag [#allocation6], %s680
        %s682 = sand.u32 %s197, 1
        %s683 = smul.addr %s682, 8
        %s684 = scalar_lea.vmem [#allocation5], %s683
        // Predicated region
        $region49: #{tpu_custom_call.1} parent=39 // pred_check
          %p685 = pneg %p179
        $region50: #{tpu_custom_call.1} parent=39 // pred_check_branch
          %687 = sbr.rel (%p685) target = $region52
        $region51: #{tpu_custom_call.1} parent=39 // pred_region
          %s689 = ssub.s32 128, 128
          %690 = vsyncadd %s676, %s689
          %s691 = smul.addr %s28, 128
          %s692 = scalar_lea.hbm %s5, %s691
          %s694 = sshll.u32 %s679, 4
          %s695 = int_to_ptr.vmem [resolvable:$true] %s694
          %697 = dma.vmem_to_hbm [thread:$0]  %s695, 128, %s692, %s676
        $region52: #{tpu_custom_call.1} parent=39 // pred_fallthru
          _
        // Predicated region
        $region53: #{tpu_custom_call.1} parent=39 // pred_check
          %p698 = pneg %p207
        $region54: #{tpu_custom_call.1} parent=39 // pred_check_branch
          %700 = sbr.rel (%p698) target = $region56
        $region55: #{tpu_custom_call.1} parent=39 // pred_region
          %s702 = ssub.s32 128, 128
          %703 = vsyncadd %s681, %s702
          %s704 = smul.addr %s28, 4
          %s705 = sadd.s32 %s29, %s704
          %s706 = smul.addr %s705, 128
          %s707 = scalar_lea.hbm %s6, %s706
          %s709 = sshll.u32 %s684, 4
          %s710 = int_to_ptr.vmem [resolvable:$true] %s709
          %712 = dma.vmem_to_hbm [thread:$0]  %s710, 128, %s707, %s681
        $region56: #{tpu_custom_call.1} parent=39 // pred_fallthru
          _
      $region40: #{tpu_custom_call.1} parent=5 // pred_fallthru
        _
      %p713 = scmp.le.s32.totalorder 2, %s19
      // Predicated region
      $region57: #{tpu_custom_call.1} parent=5 // pred_check
        %p714 = pneg %p713
      $region58: #{tpu_custom_call.1} parent=5 // pred_check_branch
        %716 = sbr.rel (%p714) target = $region60
      $region59: #{tpu_custom_call.1} parent=5 // pred_region
        %s717 = ssub.s32 %s19, 2
        // Predicated region
        $region61: #{tpu_custom_call.1} parent=59 // pred_check
          %p718 = pneg %p185
        $region62: #{tpu_custom_call.1} parent=59 // pred_check_branch
          %720 = sbr.rel (%p718) target = $region64
        $region63: #{tpu_custom_call.1} parent=59 // pred_region
          %s721 = sand.u32 %s170, 1
          %s722 = scalar_lea.sflag [#allocation4], %s721
          %s723 = sand.u32 %s170, 1
          %s724 = smul.addr %s723, 8
          %s725 = scalar_lea.vmem [#allocation3], %s724
          %726 = dma.done %s722, 128
        $region64: #{tpu_custom_call.1} parent=59 // pred_fallthru
          _
        // Predicated region
        $region65: #{tpu_custom_call.1} parent=59 // pred_check
          %p727 = pneg %p213
        $region66: #{tpu_custom_call.1} parent=59 // pred_check_branch
          %729 = sbr.rel (%p727) target = $region68
        $region67: #{tpu_custom_call.1} parent=59 // pred_region
          %s730 = sand.u32 %s198, 1
          %s731 = scalar_lea.sflag [#allocation6], %s730
          %s732 = sand.u32 %s198, 1
          %s733 = smul.addr %s732, 8
          %s734 = scalar_lea.vmem [#allocation5], %s733
          %735 = dma.done %s731, 128
        $region68: #{tpu_custom_call.1} parent=59 // pred_fallthru
          _
      $region60: #{tpu_custom_call.1} parent=5 // pred_fallthru
        _
    $region6: #{tpu_custom_call.1} parent=1 // loop_footer
      %s23 = sadd.s32 1, %s19
    $region7: #{tpu_custom_call.1} parent=1 // loop_footer_branch
      %18 = sbr.rel target = $region3
    $region8: #{tpu_custom_call.1} parent=1 // loop_exit
      _
    %736 = vsyncpa [#allocation4], 1
    %s737 = scalar_lea.sflag [#allocation4], 1
    %738 = vsyncpa %s737, 1
    %739 = vsyncpa [#allocation6], 1
    %s740 = scalar_lea.sflag [#allocation6], 1
    %741 = vsyncpa %s740, 1

</llo_original>
